<compile_context>
chip_gen: v7x
topology: tpu7x:2x2x1
jax: 0.10.0
libtpu: 0.0.40
codegen_flags: <defaults>
</compile_context>

<pallas_src>
from functools import partial

import numpy as np
import jax
import jax.numpy as jnp
from jax.experimental import pallas as pl
from jax.experimental.pallas import tpu as pltpu  # noqa: F401  (TPU backend)

HIDDEN = 16  # fixed hidden_size of the torch LSTM


def _fused_lstm_kernel(x_ref, wih_ref, whh_ref, b_ref, out_ref, *,
                       seq_len, batch, sh):
    """Single-program fused multi-scale LSTM.

    x_ref  : (B*T, S*F)   rows batch-major (b outer, t inner)
    wih_ref: (S*F, 4*S*H) block-diagonal input->gate weights, gate-grouped cols
    whh_ref: (S*H, 4*S*H) block-diagonal hidden->gate weights, gate-grouped cols
    b_ref  : (1, 4*S*H)   combined bias (b_ih + b_hh), gate-grouped cols
    out_ref: (B, T*S*H)   h_t lane-concatenated over t (single dense store)

    Gate column groups follow PyTorch order: [ i | f | g | o ], each S*H wide.
    """
    # Hoisted, loop-invariant loads.
    wih = wih_ref[...]
    whh = whh_ref[...]
    b = b_ref[...]

    # Input projection for ALL timesteps at once (off the recurrent chain).
    xw = jnp.dot(x_ref[...], wih,
                 preferred_element_type=jnp.float32) + b        # (B*T, 4*S*H)
    # (B*T, 4*S*H) -> (B, T, 4*S*H): last two dims stay (8, 128)-tile aligned,
    # so this reshape is layout-only (no VMEM copy on the recurrence chain).
    xw = xw.reshape(batch, seq_len, 4 * sh)

    h = jnp.zeros((batch, sh), jnp.float32)
    c = jnp.zeros((batch, sh), jnp.float32)
    hs = []
    for t in range(seq_len):        # static unroll (T is small & fixed)
        gates = xw[:, t, :] + jnp.dot(h, whh,
                                      preferred_element_type=jnp.float32)
        sig = jax.nn.sigmoid(gates)     # one full-width (128-lane) EUP pass
        tng = jnp.tanh(gates)           # one full-width (128-lane) EUP pass
        i_g = sig[:, 0 * sh:1 * sh]
        f_g = sig[:, 1 * sh:2 * sh]
        g_g = tng[:, 2 * sh:3 * sh]
        o_g = sig[:, 3 * sh:4 * sh]
        c = f_g * c + i_g * g_g
        h = o_g * jnp.tanh(c)
        hs.append(h)

    # Single lane-dense store (B, T*S*H); no per-step 16-lane masked stores.
    out_ref[...] = jnp.concatenate(hs, axis=-1)


def _multi_scale_forward(xs, wih_bd, whh_bd, bias, *,
                         channels, resolutions, hidden):
    """Jitted forward: reshape/concat -> fused kernel -> per-scale unflatten."""
    S = len(xs)
    B, T = xs[0].shape[0], xs[0].shape[1]
    sh = S * hidden

    # Pure reshape (no transpose) + lane concat: (B*T, S*F), batch-major rows.
    x_all = jnp.concatenate(
        [x.astype(jnp.float32).reshape(B * T, -1) for x in xs], axis=-1)

    out = pl.pallas_call(
        partial(_fused_lstm_kernel, seq_len=T, batch=B, sh=sh),
        out_shape=jax.ShapeDtypeStruct((B, T * sh), jnp.float32),
        # No grid / BlockSpecs: whole (tiny) arrays live in VMEM for the single
        # program; total working set is a few KiB on every TPU generation.
    )(x_all, wih_bd, whh_bd, bias)                       # (B, T*S*H)

    out = out.reshape(B, T, S, hidden)
    return tuple(
        out[:, :, s, :].reshape(B, T, c, r, r)           # Unflatten(2->(C,R,R))
        for s, (c, r) in enumerate(zip(channels, resolutions)))


class MultiScaleLSTMPallas:
    """JAX/Pallas re-implementation of MultiScaleLSTM.forward."""

    def __init__(self, channels, resolutions, number_frames, key):
        self.channels = list(channels)
        self.resolutions = list(resolutions)
        self.number_frames = number_frames
        self.num_feats = len(channels)

        S, H = self.num_feats, HIDDEN
        bound = 1.0 / np.sqrt(H)
        per_scale, feat_dims = [], []
        for i, (c, r) in enumerate(zip(self.channels, self.resolutions)):
            feat_dim = c * r * r
            # torch's Unflatten(dim=2 -> (C,R,R)) of the (B,T,16) LSTM output
            # only works when C*R*R == hidden_size == 16.
            assert feat_dim == H, (
                f"scale {i}: C*R*R={feat_dim} must equal hidden_size={H}")
            key, k1, k2, k3, k4 = jax.random.split(key, 5)
            w_ih = jax.random.uniform(k1, (4 * H, feat_dim),
                                      minval=-bound, maxval=bound,
                                      dtype=jnp.float32)
            w_hh = jax.random.uniform(k2, (4 * H, H),
                                      minval=-bound, maxval=bound,
                                      dtype=jnp.float32)
            b_ih = jax.random.uniform(k3, (4 * H,), minval=-bound,
                                      maxval=bound, dtype=jnp.float32)
            b_hh = jax.random.uniform(k4, (4 * H,), minval=-bound,
                                      maxval=bound, dtype=jnp.float32)
            per_scale.append((np.asarray(w_ih), np.asarray(w_hh),
                              np.asarray(b_ih), np.asarray(b_hh)))
            feat_dims.append(feat_dim)

        # Precompute block-diagonal, gate-grouped weights / bias ONCE.
        # Column layout: [ i(S*H) | f(S*H) | g(S*H) | o(S*H) ], scale-major
        # inside each gate group (matches the h layout [scale0 H | scale1 H]).
        SH = S * H
        F_total = sum(feat_dims)
        wih_bd = np.zeros((F_total, 4 * SH), np.float32)
        whh_bd = np.zeros((SH, 4 * SH), np.float32)
        bias = np.zeros((1, 4 * SH), np.float32)
        row = 0
        for s, (w_ih, w_hh, b_ih, b_hh) in enumerate(per_scale):
            F_s = feat_dims[s]
            bsum = b_ih + b_hh
            for g in range(4):                    # PyTorch gate order [i,f,g,o]
                col = g * SH + s * H
                wih_bd[row:row + F_s, col:col + H] = w_ih[g * H:(g + 1) * H, :].T
                whh_bd[s * H:(s + 1) * H, col:col + H] = w_hh[g * H:(g + 1) * H, :].T
                bias[0, col:col + H] = bsum[g * H:(g + 1) * H]
            row += F_s
        self.wih_bd = jnp.asarray(wih_bd)
        self.whh_bd = jnp.asarray(whh_bd)
        self.bias = jnp.asarray(bias)

        # TODO(synk): the torch module also allocates h0/c0 buffers of shape
        # (1, number_frames, feat_dim) but never feeds them to the LSTM in
        # forward(); they are dead state and intentionally omitted.

        self._forward = jax.jit(partial(
            _multi_scale_forward,
            channels=tuple(self.channels),
            resolutions=tuple(self.resolutions),
            hidden=H))

    def __call__(self, features):
        # Flatten(start_dim=2) is a pure reshape done inside the jitted forward.
        xs = tuple(features[str(i)] for i in range(self.num_feats))
        outs = self._forward(xs, self.wih_bd, self.whh_bd, self.bias)
        return {str(i): outs[i] for i in range(self.num_feats)}


if __name__ == "__main__":
    # Scales chosen so channel*resolution^2 == 16 (the only configs for which
    # the original torch forward's Unflatten is valid).
    channels = [1, 4]
    resolutions = [4, 2]
    number_frames = 8
    batch = 2

    key = jax.random.PRNGKey(0)
    key, kp, k0, k1 = jax.random.split(key, 4)

    model = MultiScaleLSTMPallas(channels, resolutions, number_frames, kp)

    features = {
        "0": jax.random.normal(k0, (batch, number_frames, 1, 4, 4),
                               dtype=jnp.float32),
        "1": jax.random.normal(k1, (batch, number_frames, 4, 2, 2),
                               dtype=jnp.float32),
    }

    out = model(features)
    for k, v in out.items():
        v = jax.block_until_ready(v)
        c, r = channels[int(k)], resolutions[int(k)]
        assert v.shape == (batch, number_frames, c, r, r), v.shape
        assert bool(jnp.all(jnp.isfinite(v)))

    print("KERNEL_OK")
</pallas_src>

<mosaic_0001>
module attributes {stable_mosaic.version = 11 : i64} {
  func.func @_fused_lstm_kernel(%arg0: memref<16x32xf32, #tpu.memory_space<vmem>>, %arg1: memref<32x128xf32, #tpu.memory_space<vmem>>, %arg2: memref<32x128xf32, #tpu.memory_space<vmem>>, %arg3: memref<1x128xf32, #tpu.memory_space<vmem>>, %arg4: memref<2x256xf32, #tpu.memory_space<vmem>>) attributes {dimension_semantics = [], scalar_prefetch = 0 : i64, scratch_operands = 0 : i64, tpu.core_type = #tpu.core_type<tc>} {
    %c0 = arith.constant 0 : index
    %c0_0 = arith.constant 0 : index
    %0 = vector.load %arg1[%c0, %c0_0] : memref<32x128xf32, #tpu.memory_space<vmem>>, vector<32x128xf32>
    %c0_1 = arith.constant 0 : index
    %c0_2 = arith.constant 0 : index
    %1 = vector.load %arg2[%c0_1, %c0_2] : memref<32x128xf32, #tpu.memory_space<vmem>>, vector<32x128xf32>
    %c0_3 = arith.constant 0 : index
    %c0_4 = arith.constant 0 : index
    %2 = vector.load %arg3[%c0_3, %c0_4] : memref<1x128xf32, #tpu.memory_space<vmem>>, vector<1x128xf32>
    %c0_5 = arith.constant 0 : index
    %c0_6 = arith.constant 0 : index
    %3 = vector.load %arg0[%c0_5, %c0_6] : memref<16x32xf32, #tpu.memory_space<vmem>>, vector<16x32xf32>
    %cst = arith.constant dense<0.000000e+00> : vector<16x128xf32>
    %4 = tpu.matmul %3, %0, %cst {dimension_numbers = #tpu.dot_dimension_numbers<[1], [0], [0], [1], [0, 0, 1, 1], [], []>} : vector<16x32xf32>, vector<32x128xf32>, vector<16x128xf32> -> vector<16x128xf32>
    %5 = vector.broadcast %2 : vector<1x128xf32> to vector<16x128xf32>
    %6 = arith.addf %4, %5 : vector<16x128xf32>
    %7 = vector.shape_cast %6 : vector<16x128xf32> to vector<2x8x128xf32>
    %cst_7 = arith.constant 0.000000e+00 : f32
    %8 = vector.broadcast %cst_7 : f32 to vector<2x32xf32>
    %cst_8 = arith.constant 0.000000e+00 : f32
    %9 = vector.broadcast %cst_8 : f32 to vector<2x32xf32>
    %10 = vector.extract_strided_slice %7 {offsets = [0, 0, 0], sizes = [2, 1, 128], strides = [1, 1, 1]} : vector<2x8x128xf32> to vector<2x1x128xf32>
    %11 = vector.shape_cast %10 : vector<2x1x128xf32> to vector<2x128xf32>
    %cst_9 = arith.constant dense<0.000000e+00> : vector<2x128xf32>
    %12 = tpu.matmul %8, %1, %cst_9 {dimension_numbers = #tpu.dot_dimension_numbers<[1], [0], [0], [1], [0, 0, 1, 1], [], []>} : vector<2x32xf32>, vector<32x128xf32>, vector<2x128xf32> -> vector<2x128xf32>
    %13 = arith.addf %11, %12 : vector<2x128xf32>
    %14 = arith.negf %13 : vector<2x128xf32>
    %15 = math.exp %14 : vector<2x128xf32>
    %cst_10 = arith.constant 1.000000e+00 : f32
    %16 = vector.broadcast %cst_10 : f32 to vector<2x128xf32>
    %17 = arith.addf %16, %15 : vector<2x128xf32>
    %18 = arith.divf %16, %17 : vector<2x128xf32>
    %19 = math.tanh %13 : vector<2x128xf32>
    %20 = vector.extract_strided_slice %18 {offsets = [0, 0], sizes = [2, 32], strides = [1, 1]} : vector<2x128xf32> to vector<2x32xf32>
    %21 = vector.extract_strided_slice %18 {offsets = [0, 32], sizes = [2, 32], strides = [1, 1]} : vector<2x128xf32> to vector<2x32xf32>
    %22 = vector.extract_strided_slice %19 {offsets = [0, 64], sizes = [2, 32], strides = [1, 1]} : vector<2x128xf32> to vector<2x32xf32>
    %23 = vector.extract_strided_slice %18 {offsets = [0, 96], sizes = [2, 32], strides = [1, 1]} : vector<2x128xf32> to vector<2x32xf32>
    %24 = arith.mulf %21, %9 : vector<2x32xf32>
    %25 = arith.mulf %20, %22 : vector<2x32xf32>
    %26 = arith.addf %24, %25 : vector<2x32xf32>
    %27 = math.tanh %26 : vector<2x32xf32>
    %28 = arith.mulf %23, %27 : vector<2x32xf32>
    %29 = vector.extract_strided_slice %7 {offsets = [0, 1, 0], sizes = [2, 1, 128], strides = [1, 1, 1]} : vector<2x8x128xf32> to vector<2x1x128xf32>
    %30 = vector.shape_cast %29 : vector<2x1x128xf32> to vector<2x128xf32>
    %cst_11 = arith.constant dense<0.000000e+00> : vector<2x128xf32>
    %31 = tpu.matmul %28, %1, %cst_11 {dimension_numbers = #tpu.dot_dimension_numbers<[1], [0], [0], [1], [0, 0, 1, 1], [], []>} : vector<2x32xf32>, vector<32x128xf32>, vector<2x128xf32> -> vector<2x128xf32>
    %32 = arith.addf %30, %31 : vector<2x128xf32>
    %33 = arith.negf %32 : vector<2x128xf32>
    %34 = math.exp %33 : vector<2x128xf32>
    %cst_12 = arith.constant 1.000000e+00 : f32
    %35 = vector.broadcast %cst_12 : f32 to vector<2x128xf32>
    %36 = arith.addf %35, %34 : vector<2x128xf32>
    %37 = arith.divf %35, %36 : vector<2x128xf32>
    %38 = math.tanh %32 : vector<2x128xf32>
    %39 = vector.extract_strided_slice %37 {offsets = [0, 0], sizes = [2, 32], strides = [1, 1]} : vector<2x128xf32> to vector<2x32xf32>
    %40 = vector.extract_strided_slice %37 {offsets = [0, 32], sizes = [2, 32], strides = [1, 1]} : vector<2x128xf32> to vector<2x32xf32>
    %41 = vector.extract_strided_slice %38 {offsets = [0, 64], sizes = [2, 32], strides = [1, 1]} : vector<2x128xf32> to vector<2x32xf32>
    %42 = vector.extract_strided_slice %37 {offsets = [0, 96], sizes = [2, 32], strides = [1, 1]} : vector<2x128xf32> to vector<2x32xf32>
    %43 = arith.mulf %40, %26 : vector<2x32xf32>
    %44 = arith.mulf %39, %41 : vector<2x32xf32>
    %45 = arith.addf %43, %44 : vector<2x32xf32>
    %46 = math.tanh %45 : vector<2x32xf32>
    %47 = arith.mulf %42, %46 : vector<2x32xf32>
    %48 = vector.extract_strided_slice %7 {offsets = [0, 2, 0], sizes = [2, 1, 128], strides = [1, 1, 1]} : vector<2x8x128xf32> to vector<2x1x128xf32>
    %49 = vector.shape_cast %48 : vector<2x1x128xf32> to vector<2x128xf32>
    %cst_13 = arith.constant dense<0.000000e+00> : vector<2x128xf32>
    %50 = tpu.matmul %47, %1, %cst_13 {dimension_numbers = #tpu.dot_dimension_numbers<[1], [0], [0], [1], [0, 0, 1, 1], [], []>} : vector<2x32xf32>, vector<32x128xf32>, vector<2x128xf32> -> vector<2x128xf32>
    %51 = arith.addf %49, %50 : vector<2x128xf32>
    %52 = arith.negf %51 : vector<2x128xf32>
    %53 = math.exp %52 : vector<2x128xf32>
    %cst_14 = arith.constant 1.000000e+00 : f32
    %54 = vector.broadcast %cst_14 : f32 to vector<2x128xf32>
    %55 = arith.addf %54, %53 : vector<2x128xf32>
    %56 = arith.divf %54, %55 : vector<2x128xf32>
    %57 = math.tanh %51 : vector<2x128xf32>
    %58 = vector.extract_strided_slice %56 {offsets = [0, 0], sizes = [2, 32], strides = [1, 1]} : vector<2x128xf32> to vector<2x32xf32>
    %59 = vector.extract_strided_slice %56 {offsets = [0, 32], sizes = [2, 32], strides = [1, 1]} : vector<2x128xf32> to vector<2x32xf32>
    %60 = vector.extract_strided_slice %57 {offsets = [0, 64], sizes = [2, 32], strides = [1, 1]} : vector<2x128xf32> to vector<2x32xf32>
    %61 = vector.extract_strided_slice %56 {offsets = [0, 96], sizes = [2, 32], strides = [1, 1]} : vector<2x128xf32> to vector<2x32xf32>
    %62 = arith.mulf %59, %45 : vector<2x32xf32>
    %63 = arith.mulf %58, %60 : vector<2x32xf32>
    %64 = arith.addf %62, %63 : vector<2x32xf32>
    %65 = math.tanh %64 : vector<2x32xf32>
    %66 = arith.mulf %61, %65 : vector<2x32xf32>
    %67 = vector.extract_strided_slice %7 {offsets = [0, 3, 0], sizes = [2, 1, 128], strides = [1, 1, 1]} : vector<2x8x128xf32> to vector<2x1x128xf32>
    %68 = vector.shape_cast %67 : vector<2x1x128xf32> to vector<2x128xf32>
    %cst_15 = arith.constant dense<0.000000e+00> : vector<2x128xf32>
    %69 = tpu.matmul %66, %1, %cst_15 {dimension_numbers = #tpu.dot_dimension_numbers<[1], [0], [0], [1], [0, 0, 1, 1], [], []>} : vector<2x32xf32>, vector<32x128xf32>, vector<2x128xf32> -> vector<2x128xf32>
    %70 = arith.addf %68, %69 : vector<2x128xf32>
    %71 = arith.negf %70 : vector<2x128xf32>
    %72 = math.exp %71 : vector<2x128xf32>
    %cst_16 = arith.constant 1.000000e+00 : f32
    %73 = vector.broadcast %cst_16 : f32 to vector<2x128xf32>
    %74 = arith.addf %73, %72 : vector<2x128xf32>
    %75 = arith.divf %73, %74 : vector<2x128xf32>
    %76 = math.tanh %70 : vector<2x128xf32>
    %77 = vector.extract_strided_slice %75 {offsets = [0, 0], sizes = [2, 32], strides = [1, 1]} : vector<2x128xf32> to vector<2x32xf32>
    %78 = vector.extract_strided_slice %75 {offsets = [0, 32], sizes = [2, 32], strides = [1, 1]} : vector<2x128xf32> to vector<2x32xf32>
    %79 = vector.extract_strided_slice %76 {offsets = [0, 64], sizes = [2, 32], strides = [1, 1]} : vector<2x128xf32> to vector<2x32xf32>
    %80 = vector.extract_strided_slice %75 {offsets = [0, 96], sizes = [2, 32], strides = [1, 1]} : vector<2x128xf32> to vector<2x32xf32>
    %81 = arith.mulf %78, %64 : vector<2x32xf32>
    %82 = arith.mulf %77, %79 : vector<2x32xf32>
    %83 = arith.addf %81, %82 : vector<2x32xf32>
    %84 = math.tanh %83 : vector<2x32xf32>
    %85 = arith.mulf %80, %84 : vector<2x32xf32>
    %86 = vector.extract_strided_slice %7 {offsets = [0, 4, 0], sizes = [2, 1, 128], strides = [1, 1, 1]} : vector<2x8x128xf32> to vector<2x1x128xf32>
    %87 = vector.shape_cast %86 : vector<2x1x128xf32> to vector<2x128xf32>
    %cst_17 = arith.constant dense<0.000000e+00> : vector<2x128xf32>
    %88 = tpu.matmul %85, %1, %cst_17 {dimension_numbers = #tpu.dot_dimension_numbers<[1], [0], [0], [1], [0, 0, 1, 1], [], []>} : vector<2x32xf32>, vector<32x128xf32>, vector<2x128xf32> -> vector<2x128xf32>
    %89 = arith.addf %87, %88 : vector<2x128xf32>
    %90 = arith.negf %89 : vector<2x128xf32>
    %91 = math.exp %90 : vector<2x128xf32>
    %cst_18 = arith.constant 1.000000e+00 : f32
    %92 = vector.broadcast %cst_18 : f32 to vector<2x128xf32>
    %93 = arith.addf %92, %91 : vector<2x128xf32>
    %94 = arith.divf %92, %93 : vector<2x128xf32>
    %95 = math.tanh %89 : vector<2x128xf32>
    %96 = vector.extract_strided_slice %94 {offsets = [0, 0], sizes = [2, 32], strides = [1, 1]} : vector<2x128xf32> to vector<2x32xf32>
    %97 = vector.extract_strided_slice %94 {offsets = [0, 32], sizes = [2, 32], strides = [1, 1]} : vector<2x128xf32> to vector<2x32xf32>
    %98 = vector.extract_strided_slice %95 {offsets = [0, 64], sizes = [2, 32], strides = [1, 1]} : vector<2x128xf32> to vector<2x32xf32>
    %99 = vector.extract_strided_slice %94 {offsets = [0, 96], sizes = [2, 32], strides = [1, 1]} : vector<2x128xf32> to vector<2x32xf32>
    %100 = arith.mulf %97, %83 : vector<2x32xf32>
    %101 = arith.mulf %96, %98 : vector<2x32xf32>
    %102 = arith.addf %100, %101 : vector<2x32xf32>
    %103 = math.tanh %102 : vector<2x32xf32>
    %104 = arith.mulf %99, %103 : vector<2x32xf32>
    %105 = vector.extract_strided_slice %7 {offsets = [0, 5, 0], sizes = [2, 1, 128], strides = [1, 1, 1]} : vector<2x8x128xf32> to vector<2x1x128xf32>
    %106 = vector.shape_cast %105 : vector<2x1x128xf32> to vector<2x128xf32>
    %cst_19 = arith.constant dense<0.000000e+00> : vector<2x128xf32>
    %107 = tpu.matmul %104, %1, %cst_19 {dimension_numbers = #tpu.dot_dimension_numbers<[1], [0], [0], [1], [0, 0, 1, 1], [], []>} : vector<2x32xf32>, vector<32x128xf32>, vector<2x128xf32> -> vector<2x128xf32>
    %108 = arith.addf %106, %107 : vector<2x128xf32>
    %109 = arith.negf %108 : vector<2x128xf32>
    %110 = math.exp %109 : vector<2x128xf32>
    %cst_20 = arith.constant 1.000000e+00 : f32
    %111 = vector.broadcast %cst_20 : f32 to vector<2x128xf32>
    %112 = arith.addf %111, %110 : vector<2x128xf32>
    %113 = arith.divf %111, %112 : vector<2x128xf32>
    %114 = math.tanh %108 : vector<2x128xf32>
    %115 = vector.extract_strided_slice %113 {offsets = [0, 0], sizes = [2, 32], strides = [1, 1]} : vector<2x128xf32> to vector<2x32xf32>
    %116 = vector.extract_strided_slice %113 {offsets = [0, 32], sizes = [2, 32], strides = [1, 1]} : vector<2x128xf32> to vector<2x32xf32>
    %117 = vector.extract_strided_slice %114 {offsets = [0, 64], sizes = [2, 32], strides = [1, 1]} : vector<2x128xf32> to vector<2x32xf32>
    %118 = vector.extract_strided_slice %113 {offsets = [0, 96], sizes = [2, 32], strides = [1, 1]} : vector<2x128xf32> to vector<2x32xf32>
    %119 = arith.mulf %116, %102 : vector<2x32xf32>
    %120 = arith.mulf %115, %117 : vector<2x32xf32>
    %121 = arith.addf %119, %120 : vector<2x32xf32>
    %122 = math.tanh %121 : vector<2x32xf32>
    %123 = arith.mulf %118, %122 : vector<2x32xf32>
    %124 = vector.extract_strided_slice %7 {offsets = [0, 6, 0], sizes = [2, 1, 128], strides = [1, 1, 1]} : vector<2x8x128xf32> to vector<2x1x128xf32>
    %125 = vector.shape_cast %124 : vector<2x1x128xf32> to vector<2x128xf32>
    %cst_21 = arith.constant dense<0.000000e+00> : vector<2x128xf32>
    %126 = tpu.matmul %123, %1, %cst_21 {dimension_numbers = #tpu.dot_dimension_numbers<[1], [0], [0], [1], [0, 0, 1, 1], [], []>} : vector<2x32xf32>, vector<32x128xf32>, vector<2x128xf32> -> vector<2x128xf32>
    %127 = arith.addf %125, %126 : vector<2x128xf32>
    %128 = arith.negf %127 : vector<2x128xf32>
    %129 = math.exp %128 : vector<2x128xf32>
    %cst_22 = arith.constant 1.000000e+00 : f32
    %130 = vector.broadcast %cst_22 : f32 to vector<2x128xf32>
    %131 = arith.addf %130, %129 : vector<2x128xf32>
    %132 = arith.divf %130, %131 : vector<2x128xf32>
    %133 = math.tanh %127 : vector<2x128xf32>
    %134 = vector.extract_strided_slice %132 {offsets = [0, 0], sizes = [2, 32], strides = [1, 1]} : vector<2x128xf32> to vector<2x32xf32>
    %135 = vector.extract_strided_slice %132 {offsets = [0, 32], sizes = [2, 32], strides = [1, 1]} : vector<2x128xf32> to vector<2x32xf32>
    %136 = vector.extract_strided_slice %133 {offsets = [0, 64], sizes = [2, 32], strides = [1, 1]} : vector<2x128xf32> to vector<2x32xf32>
    %137 = vector.extract_strided_slice %132 {offsets = [0, 96], sizes = [2, 32], strides = [1, 1]} : vector<2x128xf32> to vector<2x32xf32>
    %138 = arith.mulf %135, %121 : vector<2x32xf32>
    %139 = arith.mulf %134, %136 : vector<2x32xf32>
    %140 = arith.addf %138, %139 : vector<2x32xf32>
    %141 = math.tanh %140 : vector<2x32xf32>
    %142 = arith.mulf %137, %141 : vector<2x32xf32>
    %143 = vector.extract_strided_slice %7 {offsets = [0, 7, 0], sizes = [2, 1, 128], strides = [1, 1, 1]} : vector<2x8x128xf32> to vector<2x1x128xf32>
    %144 = vector.shape_cast %143 : vector<2x1x128xf32> to vector<2x128xf32>
    %cst_23 = arith.constant dense<0.000000e+00> : vector<2x128xf32>
    %145 = tpu.matmul %142, %1, %cst_23 {dimension_numbers = #tpu.dot_dimension_numbers<[1], [0], [0], [1], [0, 0, 1, 1], [], []>} : vector<2x32xf32>, vector<32x128xf32>, vector<2x128xf32> -> vector<2x128xf32>
    %146 = arith.addf %144, %145 : vector<2x128xf32>
    %147 = arith.negf %146 : vector<2x128xf32>
    %148 = math.exp %147 : vector<2x128xf32>
    %cst_24 = arith.constant 1.000000e+00 : f32
    %149 = vector.broadcast %cst_24 : f32 to vector<2x128xf32>
    %150 = arith.addf %149, %148 : vector<2x128xf32>
    %151 = arith.divf %149, %150 : vector<2x128xf32>
    %152 = math.tanh %146 : vector<2x128xf32>
    %153 = vector.extract_strided_slice %151 {offsets = [0, 0], sizes = [2, 32], strides = [1, 1]} : vector<2x128xf32> to vector<2x32xf32>
    %154 = vector.extract_strided_slice %151 {offsets = [0, 32], sizes = [2, 32], strides = [1, 1]} : vector<2x128xf32> to vector<2x32xf32>
    %155 = vector.extract_strided_slice %152 {offsets = [0, 64], sizes = [2, 32], strides = [1, 1]} : vector<2x128xf32> to vector<2x32xf32>
    %156 = vector.extract_strided_slice %151 {offsets = [0, 96], sizes = [2, 32], strides = [1, 1]} : vector<2x128xf32> to vector<2x32xf32>
    %157 = arith.mulf %154, %140 : vector<2x32xf32>
    %158 = arith.mulf %153, %155 : vector<2x32xf32>
    %159 = arith.addf %157, %158 : vector<2x32xf32>
    %160 = math.tanh %159 : vector<2x32xf32>
    %161 = arith.mulf %156, %160 : vector<2x32xf32>
    %162 = tpu.concatenate %28, %47, %66, %85, %104, %123, %142, %161 in 1 : vector<2x32xf32>, vector<2x32xf32>, vector<2x32xf32>, vector<2x32xf32>, vector<2x32xf32>, vector<2x32xf32>, vector<2x32xf32>, vector<2x32xf32> -> vector<2x256xf32>
    %c0_25 = arith.constant 0 : index
    %c0_26 = arith.constant 0 : index
    %163 = vector.load %arg4[%c0_25, %c0_26] : memref<2x256xf32, #tpu.memory_space<vmem>>, vector<2x256xf32>
    tpu.vector_store %arg4[%c0_25, %c0_26], %162 {strides = array<i32>} : memref<2x256xf32, #tpu.memory_space<vmem>>, vector<2x256xf32>,
    return
  }
}

</mosaic_0001>

<llo_original>
// kernel: _multi_scale_forward.1
$region0: #{_multi_scale_forward.1}
  #allocation0 [shape = 'u32[]', space=smem, size = 0x4, offset = 0x4, fixed_abs, tag = 'smem constant byte address 0x4 - core index']
  #allocation1 [shape = 'u32[144,128]{1,0:T(1,128)}', space=vmem, size = 0x12000, scoped, tag = 'internal scratch']
  %s0 = inlined_call_operand.vmem [shape: f32[16,32], index: 0, kind: input, shape index: {}]
  %s1 = inlined_call_operand.vmem [shape: f32[32,128], index: 1, kind: input, shape index: {}]
  %s2 = inlined_call_operand.vmem [shape: f32[32,128], index: 2, kind: input, shape index: {}]
  %s3 = inlined_call_operand.vmem [shape: f32[1,128], index: 3, kind: input, shape index: {}]
  %s4 = inlined_call_operand.vmem [shape: f32[2,256], index: 4, kind: output, shape index: {}]
  %s5 = sld [smem:[#allocation0]]
  $region26: #{_multi_scale_forward.1} parent=0
    _
  %s7 = ssub.s32 1, %s5
  %s8 = scalar_select 0, %s7, %s5
  // Predicated region
  $region2: #{_multi_scale_forward.1} parent=0 // pred_check
    _
  $region3: #{_multi_scale_forward.1} parent=0 // pred_check_branch
    %10 = sbr.rel (0) target = $region5
  $region4: #{_multi_scale_forward.1} parent=0 // pred_region
    _
  $region5: #{_multi_scale_forward.1} parent=0 // pred_fallthru
    _
  // Predicated region
  $region6: #{_multi_scale_forward.1} parent=0 // pred_check
    _
  $region7: #{_multi_scale_forward.1} parent=0 // pred_check_branch
    %12 = sbr.rel (0) target = $region9
  $region8: #{_multi_scale_forward.1} parent=0 // pred_region
    _
  $region9: #{_multi_scale_forward.1} parent=0 // pred_fallthru
    _
  // Predicated region
  $region10: #{_multi_scale_forward.1} parent=0 // pred_check
    _
  $region11: #{_multi_scale_forward.1} parent=0 // pred_check_branch
    %14 = sbr.rel (0) target = $region13
  $region12: #{_multi_scale_forward.1} parent=0 // pred_region
    _
  $region13: #{_multi_scale_forward.1} parent=0 // pred_fallthru
    _
  // Predicated region
  $region14: #{_multi_scale_forward.1} parent=0 // pred_check
    _
  $region15: #{_multi_scale_forward.1} parent=0 // pred_check_branch
    %16 = sbr.rel (0) target = $region17
  $region16: #{_multi_scale_forward.1} parent=0 // pred_region
    _
  $region17: #{_multi_scale_forward.1} parent=0 // pred_fallthru
    _
  %v17 = vld [vmem:[%s1] sm:$0xff]
  %v18 = vld [vmem:[%s1 + $0x8] sm:$0xff]
  %v19 = vld [vmem:[%s1 + $0x10] sm:$0xff]
  %v20 = vld [vmem:[%s1 + $0x18] sm:$0xff]
  %v21 = vld [vmem:[%s2] sm:$0xff]
  %v22 = vld [vmem:[%s2 + $0x8] sm:$0xff]
  %v23 = vld [vmem:[%s2 + $0x10] sm:$0xff]
  %v24 = vld [vmem:[%s2 + $0x18] sm:$0xff]
  %v25 = vld [vmem:[%s3] sm:$0x1]
  %v26 = vld [vmem:[%s0] sm:$0xff]
  %v27 = vld [vmem:[%s0 + $0x8] sm:$0xff]
  %v29 = vlaneseq
  %v30 = vshrl.u32 %v29, 7
  %v31 = vsub.s32 0, %v30
  %v32 = vrot.slane %v25, %v31
  %vm34 = vcmask 261120
  %v36 = vsel %vm34, %v26, 0
  %v39 = vsel %vm34, %v27, 0
  %41 = vmatprep.subr.mxu0 0.0
  %42 = vmatpush1.msra.mxu0 %v17
  %43 = vmatprep.subr.mxu0 0.0
  %44 = vmatpush1.msra.mxu0 %v18
  %45 = vmatprep.subr.mxu0 0.0
  %46 = vmatpush1.msra.mxu0 %v19
  %47 = vmatprep.subr.mxu0 0.0
  %48 = vmatpush1.msra.mxu0 %v20
  %49 = vmatprep.subr.mxu0 0.0
  %50 = vmatpush1.msra.mxu0 0.0
  %51 = vmatprep.subr.mxu0 0.0
  %52 = vmatpush1.msra.mxu0 0.0
  %53 = vmatprep.subr.mxu0 0.0
  %54 = vmatpush1.msra.mxu0 0.0
  %55 = vmatprep.subr.mxu0 0.0
  %56 = vmatpush1.msra.mxu0 0.0
  %57 = vmatprep.subr.mxu0 0.0
  %58 = vmatpush1.msra.mxu0 0.0
  %59 = vmatprep.subr.mxu0 0.0
  %60 = vmatpush1.msra.mxu0 0.0
  %61 = vmatprep.subr.mxu0 0.0
  %62 = vmatpush1.msra.mxu0 0.0
  %63 = vmatprep.subr.mxu0 0.0
  %64 = vmatpush1.msra.mxu0 0.0
  %65 = vmatprep.subr.mxu0 0.0
  %66 = vmatpush1.msra.mxu0 0.0
  %67 = vmatprep.subr.mxu0 0.0
  %68 = vmatpush1.msra.mxu0 0.0
  %69 = vmatprep.subr.mxu0 0.0
  %70 = vmatpush1.msra.mxu0 0.0
  %71 = vmatprep.subr.mxu0 0.0
  %72 = vmatpush1.msra.mxu0 0.0
  %73 = vmatprep.subr.mxu0 0.0
  %74 = vmatpush1.msra.mxu0 0.0
  %75 = vmatprep.subr.mxu0 0.0
  %76 = vmatpush1.msra.mxu0 0.0
  %77 = vmatprep.subr.mxu0 0.0
  %78 = vmatpush1.msra.mxu0 0.0
  %79 = vmatprep.subr.mxu0 0.0
  %80 = vmatpush1.msra.mxu0 0.0
  %81 = vmatprep.subr.mxu0 0.0
  %82 = vmatpush1.msra.mxu0 0.0
  %83 = vmatprep.subr.mxu0 0.0
  %84 = vmatpush1.msra.mxu0 0.0
  %85 = vmatprep.subr.mxu0 0.0
  %86 = vmatpush1.msra.mxu0 0.0
  %87 = vmatprep.subr.mxu0 0.0
  %88 = vmatpush1.msra.mxu0 0.0
  %89 = vmatprep.subr.mxu0 0.0
  %90 = vmatpush1.msra.mxu0 0.0
  %91 = vmatprep.subr.mxu0 0.0
  %92 = vmatpush1.msra.mxu0 0.0
  %93 = vmatprep.subr.mxu0 0.0
  %94 = vmatpush1.msra.mxu0 0.0
  %95 = vmatprep.subr.mxu0 0.0
  %96 = vmatpush1.msra.mxu0 0.0
  %97 = vmatprep.subr.mxu0 0.0
  %98 = vmatpush1.msra.mxu0 0.0
  %99 = vmatprep.subr.mxu0 0.0
  %100 = vmatpush1.msra.mxu0 0.0
  %101 = vmatprep.subr.mxu0 0.0
  %102 = vmatpush1.msra.mxu0 0.0
  %103 = vmatprep.subr.mxu0 0.0
  %104 = vmatpush1.msra.mxu0 0.0
  %105 = vmatprep.mubr.f32.mxu0 0.0
  %106 = vmatmul.mubr.f32.gmra.mrb[0].mxu0 %v36
  %v107 = vpop.f32.mrb[0].mxu0
  %v108 = vadd.f32 %v32, %v107
  %v109 = vpop.f32.mrb[0].mxu0
  %110 = vmatprep.mubr.f32.mxu0 0.0
  %111 = vmatmul.mubr.f32.gmra.mrb[0].mxu0 %v39
  %v112 = vpop.f32.mrb[0].mxu0
  %v113 = vadd.f32 %v32, %v112
  %v114 = vpop.f32.mrb[0].mxu0
  %115 = vdwg.mxu0
  %v117 = vsel %vm34, 0.0, 0
  %119 = vmatprep.subr.mxu0 0.0
  %120 = vmatpush1.msra.mxu0 %v21
  %121 = vmatprep.subr.mxu0 0.0
  %122 = vmatpush1.msra.mxu0 %v22
  %123 = vmatprep.subr.mxu0 0.0
  %124 = vmatpush1.msra.mxu0 %v23
  %125 = vmatprep.subr.mxu0 0.0
  %126 = vmatpush1.msra.mxu0 %v24
  %127 = vmatprep.subr.mxu0 0.0
  %128 = vmatpush1.msra.mxu0 0.0
  %129 = vmatprep.subr.mxu0 0.0
  %130 = vmatpush1.msra.mxu0 0.0
  %131 = vmatprep.subr.mxu0 0.0
  %132 = vmatpush1.msra.mxu0 0.0
  %133 = vmatprep.subr.mxu0 0.0
  %134 = vmatpush1.msra.mxu0 0.0
  %135 = vmatprep.subr.mxu0 0.0
  %136 = vmatpush1.msra.mxu0 0.0
  %137 = vmatprep.subr.mxu0 0.0
  %138 = vmatpush1.msra.mxu0 0.0
  %139 = vmatprep.subr.mxu0 0.0
  %140 = vmatpush1.msra.mxu0 0.0
  %141 = vmatprep.subr.mxu0 0.0
  %142 = vmatpush1.msra.mxu0 0.0
  %143 = vmatprep.subr.mxu0 0.0
  %144 = vmatpush1.msra.mxu0 0.0
  %145 = vmatprep.subr.mxu0 0.0
  %146 = vmatpush1.msra.mxu0 0.0
  %147 = vmatprep.subr.mxu0 0.0
  %148 = vmatpush1.msra.mxu0 0.0
  %149 = vmatprep.subr.mxu0 0.0
  %150 = vmatpush1.msra.mxu0 0.0
  %151 = vmatprep.subr.mxu0 0.0
  %152 = vmatpush1.msra.mxu0 0.0
  %153 = vmatprep.subr.mxu0 0.0
  %154 = vmatpush1.msra.mxu0 0.0
  %155 = vmatprep.subr.mxu0 0.0
  %156 = vmatpush1.msra.mxu0 0.0
  %157 = vmatprep.subr.mxu0 0.0
  %158 = vmatpush1.msra.mxu0 0.0
  %159 = vmatprep.subr.mxu0 0.0
  %160 = vmatpush1.msra.mxu0 0.0
  %161 = vmatprep.subr.mxu0 0.0
  %162 = vmatpush1.msra.mxu0 0.0
  %163 = vmatprep.subr.mxu0 0.0
  %164 = vmatpush1.msra.mxu0 0.0
  %165 = vmatprep.subr.mxu0 0.0
  %166 = vmatpush1.msra.mxu0 0.0
  %167 = vmatprep.subr.mxu0 0.0
  %168 = vmatpush1.msra.mxu0 0.0
  %169 = vmatprep.subr.mxu0 0.0
  %170 = vmatpush1.msra.mxu0 0.0
  %171 = vmatprep.subr.mxu0 0.0
  %172 = vmatpush1.msra.mxu0 0.0
  %173 = vmatprep.subr.mxu0 0.0
  %174 = vmatpush1.msra.mxu0 0.0
  %175 = vmatprep.subr.mxu0 0.0
  %176 = vmatpush1.msra.mxu0 0.0
  %177 = vmatprep.subr.mxu0 0.0
  %178 = vmatpush1.msra.mxu0 0.0
  %179 = vmatprep.subr.mxu0 0.0
  %180 = vmatpush1.msra.mxu0 0.0
  %181 = vmatprep.subr.mxu0 0.0
  %182 = vmatpush1.msra.mxu0 0.0
  %183 = vmatprep.mubr.f32.mxu0 0.0
  %184 = vmatmul.mubr.f32.gmra.mrb[0].mxu0 %v117
  %v185 = vpop.f32.mrb[0].mxu0
  %v186 = vadd.f32 0.0, %v185
  %v187 = vpop.f32.mrb[0].mxu0
  %188 = vdwg.mxu0
  %v190 = vrot.slane %v186, 1
  %v193 = vadd.f32 %v108, %v186
  %v194 = vadd.f32 %v113, %v190
  %v195 = vxor.u32 %v193, 2147483648
  %v196 = vxor.u32 %v194, 2147483648
  %v197 = vmul.f32 %v195, 1.442695
  %v198 = vpow.pop %v197
  %v199 = vmul.f32 %v196, 1.442695
  %v200 = vpow.pop %v199
  %v201 = vadd.f32 %v198, 1.0
  %v202 = vadd.f32 %v200, 1.0
  %v203 = vrcp.pop %v201
  %v204 = vmul.f32 1.0, %v203
  %v205 = vrcp.pop %v202
  %v206 = vmul.f32 1.0, %v205
  %v207 = vtanh.pop %v193
  %v208 = vtanh.pop %v194
  %v209 = vmul.f32 %v204, 0.0
  %v210 = vmul.f32 %v206, 0.0
  %213 = vrot.lane.b32.xlu0 %v207, 64
  %v214 = vpop.permute.xlu0 %213
  %215 = vrot.lane.b32.xlu0 %v208, 64
  %v216 = vpop.permute.xlu0 %215
  %v219 = vmul.f32 %v204, %v214
  %v220 = vmul.f32 %v206, %v216
  %223 = vrot.lane.b32.xlu0 %v219, 32
  %v224 = vpop.permute.xlu0 %223
  %225 = vrot.lane.b32.xlu0 %v220, 32
  %v226 = vpop.permute.xlu0 %225
  %v229 = vadd.f32 %v209, %v224
  %v230 = vadd.f32 %v210, %v226
  %v231 = vtanh.pop %v229
  %v232 = vtanh.pop %v230
  %235 = vrot.lane.b32.xlu0 %v231, 64
  %v236 = vpop.permute.xlu0 %235
  %237 = vrot.lane.b32.xlu0 %v232, 64
  %v238 = vpop.permute.xlu0 %237
  %v241 = vmul.f32 %v204, %v236
  %v242 = vmul.f32 %v206, %v238
  %v245 = vrot.slane %v242, 7
  %vm246 = vcmask 1041409
  %v247 = vsel %vm246, %v245, %v241
  %248 = vrot.lane.b32.xlu0 %v247, 32
  %v249 = vpop.permute.xlu0 %248
  %v250 = vsel %vm34, %v249, 0
  %252 = vmatprep.subr.mxu0 0.0
  %253 = vmatpush1.msra.mxu0 %v21
  %254 = vmatprep.subr.mxu0 0.0
  %255 = vmatpush1.msra.mxu0 %v22
  %256 = vmatprep.subr.mxu0 0.0
  %257 = vmatpush1.msra.mxu0 %v23
  %258 = vmatprep.subr.mxu0 0.0
  %259 = vmatpush1.msra.mxu0 %v24
  %260 = vmatprep.subr.mxu0 0.0
  %261 = vmatpush1.msra.mxu0 0.0
  %262 = vmatprep.subr.mxu0 0.0
  %263 = vmatpush1.msra.mxu0 0.0
  %264 = vmatprep.subr.mxu0 0.0
  %265 = vmatpush1.msra.mxu0 0.0
  %266 = vmatprep.subr.mxu0 0.0
  %267 = vmatpush1.msra.mxu0 0.0
  %268 = vmatprep.subr.mxu0 0.0
  %269 = vmatpush1.msra.mxu0 0.0
  %270 = vmatprep.subr.mxu0 0.0
  %271 = vmatpush1.msra.mxu0 0.0
  %272 = vmatprep.subr.mxu0 0.0
  %273 = vmatpush1.msra.mxu0 0.0
  %274 = vmatprep.subr.mxu0 0.0
  %275 = vmatpush1.msra.mxu0 0.0
  %276 = vmatprep.subr.mxu0 0.0
  %277 = vmatpush1.msra.mxu0 0.0
  %278 = vmatprep.subr.mxu0 0.0
  %279 = vmatpush1.msra.mxu0 0.0
  %280 = vmatprep.subr.mxu0 0.0
  %281 = vmatpush1.msra.mxu0 0.0
  %282 = vmatprep.subr.mxu0 0.0
  %283 = vmatpush1.msra.mxu0 0.0
  %284 = vmatprep.subr.mxu0 0.0
  %285 = vmatpush1.msra.mxu0 0.0
  %286 = vmatprep.subr.mxu0 0.0
  %287 = vmatpush1.msra.mxu0 0.0
  %288 = vmatprep.subr.mxu0 0.0
  %289 = vmatpush1.msra.mxu0 0.0
  %290 = vmatprep.subr.mxu0 0.0
  %291 = vmatpush1.msra.mxu0 0.0
  %292 = vmatprep.subr.mxu0 0.0
  %293 = vmatpush1.msra.mxu0 0.0
  %294 = vmatprep.subr.mxu0 0.0
  %295 = vmatpush1.msra.mxu0 0.0
  %296 = vmatprep.subr.mxu0 0.0
  %297 = vmatpush1.msra.mxu0 0.0
  %298 = vmatprep.subr.mxu0 0.0
  %299 = vmatpush1.msra.mxu0 0.0
  %300 = vmatprep.subr.mxu0 0.0
  %301 = vmatpush1.msra.mxu0 0.0
  %302 = vmatprep.subr.mxu0 0.0
  %303 = vmatpush1.msra.mxu0 0.0
  %304 = vmatprep.subr.mxu0 0.0
  %305 = vmatpush1.msra.mxu0 0.0
  %306 = vmatprep.subr.mxu0 0.0
  %307 = vmatpush1.msra.mxu0 0.0
  %308 = vmatprep.subr.mxu0 0.0
  %309 = vmatpush1.msra.mxu0 0.0
  %310 = vmatprep.subr.mxu0 0.0
  %311 = vmatpush1.msra.mxu0 0.0
  %312 = vmatprep.subr.mxu0 0.0
  %313 = vmatpush1.msra.mxu0 0.0
  %314 = vmatprep.subr.mxu0 0.0
  %315 = vmatpush1.msra.mxu0 0.0
  %316 = vmatprep.mubr.f32.mxu0 0.0
  %317 = vmatmul.mubr.f32.gmra.mrb[0].mxu0 %v250
  %v318 = vpop.f32.mrb[0].mxu0
  %v319 = vadd.f32 0.0, %v318
  %v320 = vpop.f32.mrb[0].mxu0
  %321 = vdwg.mxu0
  %v323 = vrot.slane %v319, 7
  %v326 = vadd.f32 %v108, %v323
  %v327 = vadd.f32 %v113, %v319
  %v328 = vxor.u32 %v326, 2147483648
  %v329 = vxor.u32 %v327, 2147483648
  %v330 = vmul.f32 %v328, 1.442695
  %v331 = vpow.pop %v330
  %v332 = vmul.f32 %v329, 1.442695
  %v333 = vpow.pop %v332
  %v334 = vadd.f32 %v331, 1.0
  %v335 = vadd.f32 %v333, 1.0
  %v336 = vrcp.pop %v334
  %v337 = vmul.f32 1.0, %v336
  %v338 = vrcp.pop %v335
  %v339 = vmul.f32 1.0, %v338
  %v340 = vtanh.pop %v326
  %v341 = vtanh.pop %v327
  %v344 = vrot.slane %v229, 7
  %v345 = vrot.slane %v230, 7
  %v348 = vmul.f32 %v337, %v344
  %v349 = vmul.f32 %v339, %v345
  %352 = vrot.lane.b32.xlu0 %v340, 64
  %v353 = vpop.permute.xlu0 %352
  %354 = vrot.lane.b32.xlu0 %v341, 64
  %v355 = vpop.permute.xlu0 %354
  %v358 = vmul.f32 %v337, %v353
  %v359 = vmul.f32 %v339, %v355
  %362 = vrot.lane.b32.xlu0 %v358, 32
  %v363 = vpop.permute.xlu0 %362
  %364 = vrot.lane.b32.xlu0 %v359, 32
  %v365 = vpop.permute.xlu0 %364
  %v368 = vadd.f32 %v348, %v363
  %v369 = vadd.f32 %v349, %v365
  %v370 = vtanh.pop %v368
  %v371 = vtanh.pop %v369
  %374 = vrot.lane.b32.xlu0 %v370, 64
  %v375 = vpop.permute.xlu0 %374
  %376 = vrot.lane.b32.xlu0 %v371, 64
  %v377 = vpop.permute.xlu0 %376
  %v380 = vmul.f32 %v337, %v375
  %v381 = vmul.f32 %v339, %v377
  %v384 = vrot.slane %v380, 1
  %v385 = vsel %vm246, %v381, %v384
  %386 = vrot.lane.b32.xlu0 %v385, 32
  %v387 = vpop.permute.xlu0 %386
  %v388 = vsel %vm34, %v387, 0
  %390 = vmatprep.subr.mxu0 0.0
  %391 = vmatpush1.msra.mxu0 %v21
  %392 = vmatprep.subr.mxu0 0.0
  %393 = vmatpush1.msra.mxu0 %v22
  %394 = vmatprep.subr.mxu0 0.0
  %395 = vmatpush1.msra.mxu0 %v23
  %396 = vmatprep.subr.mxu0 0.0
  %397 = vmatpush1.msra.mxu0 %v24
  %398 = vmatprep.subr.mxu0 0.0
  %399 = vmatpush1.msra.mxu0 0.0
  %400 = vmatprep.subr.mxu0 0.0
  %401 = vmatpush1.msra.mxu0 0.0
  %402 = vmatprep.subr.mxu0 0.0
  %403 = vmatpush1.msra.mxu0 0.0
  %404 = vmatprep.subr.mxu0 0.0
  %405 = vmatpush1.msra.mxu0 0.0
  %406 = vmatprep.subr.mxu0 0.0
  %407 = vmatpush1.msra.mxu0 0.0
  %408 = vmatprep.subr.mxu0 0.0
  %409 = vmatpush1.msra.mxu0 0.0
  %410 = vmatprep.subr.mxu0 0.0
  %411 = vmatpush1.msra.mxu0 0.0
  %412 = vmatprep.subr.mxu0 0.0
  %413 = vmatpush1.msra.mxu0 0.0
  %414 = vmatprep.subr.mxu0 0.0
  %415 = vmatpush1.msra.mxu0 0.0
  %416 = vmatprep.subr.mxu0 0.0
  %417 = vmatpush1.msra.mxu0 0.0
  %418 = vmatprep.subr.mxu0 0.0
  %419 = vmatpush1.msra.mxu0 0.0
  %420 = vmatprep.subr.mxu0 0.0
  %421 = vmatpush1.msra.mxu0 0.0
  %422 = vmatprep.subr.mxu0 0.0
  %423 = vmatpush1.msra.mxu0 0.0
  %424 = vmatprep.subr.mxu0 0.0
  %425 = vmatpush1.msra.mxu0 0.0
  %426 = vmatprep.subr.mxu0 0.0
  %427 = vmatpush1.msra.mxu0 0.0
  %428 = vmatprep.subr.mxu0 0.0
  %429 = vmatpush1.msra.mxu0 0.0
  %430 = vmatprep.subr.mxu0 0.0
  %431 = vmatpush1.msra.mxu0 0.0
  %432 = vmatprep.subr.mxu0 0.0
  %433 = vmatpush1.msra.mxu0 0.0
  %434 = vmatprep.subr.mxu0 0.0
  %435 = vmatpush1.msra.mxu0 0.0
  %436 = vmatprep.subr.mxu0 0.0
  %437 = vmatpush1.msra.mxu0 0.0
  %438 = vmatprep.subr.mxu0 0.0
  %439 = vmatpush1.msra.mxu0 0.0
  %440 = vmatprep.subr.mxu0 0.0
  %441 = vmatpush1.msra.mxu0 0.0
  %442 = vmatprep.subr.mxu0 0.0
  %443 = vmatpush1.msra.mxu0 0.0
  %444 = vmatprep.subr.mxu0 0.0
  %445 = vmatpush1.msra.mxu0 0.0
  %446 = vmatprep.subr.mxu0 0.0
  %447 = vmatpush1.msra.mxu0 0.0
  %448 = vmatprep.subr.mxu0 0.0
  %449 = vmatpush1.msra.mxu0 0.0
  %450 = vmatprep.subr.mxu0 0.0
  %451 = vmatpush1.msra.mxu0 0.0
  %452 = vmatprep.subr.mxu0 0.0
  %453 = vmatpush1.msra.mxu0 0.0
  %454 = vmatprep.mubr.f32.mxu0 0.0
  %455 = vmatmul.mubr.f32.gmra.mrb[0].mxu0 %v388
  %v456 = vpop.f32.mrb[0].mxu0
  %v457 = vadd.f32 0.0, %v456
  %v458 = vpop.f32.mrb[0].mxu0
  %459 = vdwg.mxu0
  %v461 = vrot.slane %v457, 6
  %v462 = vrot.slane %v457, 7
  %v465 = vadd.f32 %v108, %v461
  %v466 = vadd.f32 %v113, %v462
  %v467 = vxor.u32 %v465, 2147483648
  %v468 = vxor.u32 %v466, 2147483648
  %v469 = vmul.f32 %v467, 1.442695
  %v470 = vpow.pop %v469
  %v471 = vmul.f32 %v468, 1.442695
  %v472 = vpow.pop %v471
  %v473 = vadd.f32 %v470, 1.0
  %v474 = vadd.f32 %v472, 1.0
  %v475 = vrcp.pop %v473
  %v476 = vmul.f32 1.0, %v475
  %v477 = vrcp.pop %v474
  %v478 = vmul.f32 1.0, %v477
  %v479 = vtanh.pop %v465
  %v480 = vtanh.pop %v466
  %v483 = vrot.slane %v368, 7
  %v484 = vrot.slane %v369, 7
  %v487 = vmul.f32 %v476, %v483
  %v488 = vmul.f32 %v478, %v484
  %491 = vrot.lane.b32.xlu0 %v479, 64
  %v492 = vpop.permute.xlu0 %491
  %493 = vrot.lane.b32.xlu0 %v480, 64
  %v494 = vpop.permute.xlu0 %493
  %v497 = vmul.f32 %v476, %v492
  %v498 = vmul.f32 %v478, %v494
  %501 = vrot.lane.b32.xlu0 %v497, 32
  %v502 = vpop.permute.xlu0 %501
  %503 = vrot.lane.b32.xlu0 %v498, 32
  %v504 = vpop.permute.xlu0 %503
  %v507 = vadd.f32 %v487, %v502
  %v508 = vadd.f32 %v488, %v504
  %v509 = vtanh.pop %v507
  %v510 = vtanh.pop %v508
  %513 = vrot.lane.b32.xlu0 %v509, 64
  %v514 = vpop.permute.xlu0 %513
  %515 = vrot.lane.b32.xlu0 %v510, 64
  %v516 = vpop.permute.xlu0 %515
  %v519 = vmul.f32 %v476, %v514
  %v520 = vmul.f32 %v478, %v516
  %v523 = vrot.slane %v519, 2
  %v524 = vrot.slane %v520, 1
  %v525 = vsel %vm246, %v524, %v523
  %526 = vrot.lane.b32.xlu0 %v525, 32
  %v527 = vpop.permute.xlu0 %526
  %v528 = vsel %vm34, %v527, 0
  %530 = vmatprep.subr.mxu0 0.0
  %531 = vmatpush1.msra.mxu0 %v21
  %532 = vmatprep.subr.mxu0 0.0
  %533 = vmatpush1.msra.mxu0 %v22
  %534 = vmatprep.subr.mxu0 0.0
  %535 = vmatpush1.msra.mxu0 %v23
  %536 = vmatprep.subr.mxu0 0.0
  %537 = vmatpush1.msra.mxu0 %v24
  %538 = vmatprep.subr.mxu0 0.0
  %539 = vmatpush1.msra.mxu0 0.0
  %540 = vmatprep.subr.mxu0 0.0
  %541 = vmatpush1.msra.mxu0 0.0
  %542 = vmatprep.subr.mxu0 0.0
  %543 = vmatpush1.msra.mxu0 0.0
  %544 = vmatprep.subr.mxu0 0.0
  %545 = vmatpush1.msra.mxu0 0.0
  %546 = vmatprep.subr.mxu0 0.0
  %547 = vmatpush1.msra.mxu0 0.0
  %548 = vmatprep.subr.mxu0 0.0
  %549 = vmatpush1.msra.mxu0 0.0
  %550 = vmatprep.subr.mxu0 0.0
  %551 = vmatpush1.msra.mxu0 0.0
  %552 = vmatprep.subr.mxu0 0.0
  %553 = vmatpush1.msra.mxu0 0.0
  %554 = vmatprep.subr.mxu0 0.0
  %555 = vmatpush1.msra.mxu0 0.0
  %556 = vmatprep.subr.mxu0 0.0
  %557 = vmatpush1.msra.mxu0 0.0
  %558 = vmatprep.subr.mxu0 0.0
  %559 = vmatpush1.msra.mxu0 0.0
  %560 = vmatprep.subr.mxu0 0.0
  %561 = vmatpush1.msra.mxu0 0.0
  %562 = vmatprep.subr.mxu0 0.0
  %563 = vmatpush1.msra.mxu0 0.0
  %564 = vmatprep.subr.mxu0 0.0
  %565 = vmatpush1.msra.mxu0 0.0
  %566 = vmatprep.subr.mxu0 0.0
  %567 = vmatpush1.msra.mxu0 0.0
  %568 = vmatprep.subr.mxu0 0.0
  %569 = vmatpush1.msra.mxu0 0.0
  %570 = vmatprep.subr.mxu0 0.0
  %571 = vmatpush1.msra.mxu0 0.0
  %572 = vmatprep.subr.mxu0 0.0
  %573 = vmatpush1.msra.mxu0 0.0
  %574 = vmatprep.subr.mxu0 0.0
  %575 = vmatpush1.msra.mxu0 0.0
  %576 = vmatprep.subr.mxu0 0.0
  %577 = vmatpush1.msra.mxu0 0.0
  %578 = vmatprep.subr.mxu0 0.0
  %579 = vmatpush1.msra.mxu0 0.0
  %580 = vmatprep.subr.mxu0 0.0
  %581 = vmatpush1.msra.mxu0 0.0
  %582 = vmatprep.subr.mxu0 0.0
  %583 = vmatpush1.msra.mxu0 0.0
  %584 = vmatprep.subr.mxu0 0.0
  %585 = vmatpush1.msra.mxu0 0.0
  %586 = vmatprep.subr.mxu0 0.0
  %587 = vmatpush1.msra.mxu0 0.0
  %588 = vmatprep.subr.mxu0 0.0
  %589 = vmatpush1.msra.mxu0 0.0
  %590 = vmatprep.subr.mxu0 0.0
  %591 = vmatpush1.msra.mxu0 0.0
  %592 = vmatprep.subr.mxu0 0.0
  %593 = vmatpush1.msra.mxu0 0.0
  %594 = vmatprep.mubr.f32.mxu0 0.0
  %595 = vmatmul.mubr.f32.gmra.mrb[0].mxu0 %v528
  %v596 = vpop.f32.mrb[0].mxu0
  %v597 = vadd.f32 0.0, %v596
  %v598 = vpop.f32.mrb[0].mxu0
  %599 = vdwg.mxu0
  %v601 = vrot.slane %v597, 5
  %v602 = vrot.slane %v597, 6
  %v605 = vadd.f32 %v108, %v601
  %v606 = vadd.f32 %v113, %v602
  %v607 = vxor.u32 %v605, 2147483648
  %v608 = vxor.u32 %v606, 2147483648
  %v609 = vmul.f32 %v607, 1.442695
  %v610 = vpow.pop %v609
  %v611 = vmul.f32 %v608, 1.442695
  %v612 = vpow.pop %v611
  %v613 = vadd.f32 %v610, 1.0
  %v614 = vadd.f32 %v612, 1.0
  %v615 = vrcp.pop %v613
  %v616 = vmul.f32 1.0, %v615
  %v617 = vrcp.pop %v614
  %v618 = vmul.f32 1.0, %v617
  %v619 = vtanh.pop %v605
  %v620 = vtanh.pop %v606
  %v623 = vrot.slane %v507, 7
  %v624 = vrot.slane %v508, 7
  %v627 = vmul.f32 %v616, %v623
  %v628 = vmul.f32 %v618, %v624
  %631 = vrot.lane.b32.xlu0 %v619, 64
  %v632 = vpop.permute.xlu0 %631
  %633 = vrot.lane.b32.xlu0 %v620, 64
  %v634 = vpop.permute.xlu0 %633
  %v637 = vmul.f32 %v616, %v632
  %v638 = vmul.f32 %v618, %v634
  %641 = vrot.lane.b32.xlu0 %v637, 32
  %v642 = vpop.permute.xlu0 %641
  %643 = vrot.lane.b32.xlu0 %v638, 32
  %v644 = vpop.permute.xlu0 %643
  %v647 = vadd.f32 %v627, %v642
  %v648 = vadd.f32 %v628, %v644
  %v649 = vtanh.pop %v647
  %v650 = vtanh.pop %v648
  %653 = vrot.lane.b32.xlu0 %v649, 64
  %v654 = vpop.permute.xlu0 %653
  %655 = vrot.lane.b32.xlu0 %v650, 64
  %v656 = vpop.permute.xlu0 %655
  %v659 = vmul.f32 %v616, %v654
  %v660 = vmul.f32 %v618, %v656
  %v663 = vrot.slane %v659, 3
  %v664 = vrot.slane %v660, 2
  %v665 = vsel %vm246, %v664, %v663
  %666 = vrot.lane.b32.xlu0 %v665, 32
  %v667 = vpop.permute.xlu0 %666
  %v668 = vsel %vm34, %v667, 0
  %670 = vmatprep.subr.mxu0 0.0
  %671 = vmatpush1.msra.mxu0 %v21
  %672 = vmatprep.subr.mxu0 0.0
  %673 = vmatpush1.msra.mxu0 %v22
  %674 = vmatprep.subr.mxu0 0.0
  %675 = vmatpush1.msra.mxu0 %v23
  %676 = vmatprep.subr.mxu0 0.0
  %677 = vmatpush1.msra.mxu0 %v24
  %678 = vmatprep.subr.mxu0 0.0
  %679 = vmatpush1.msra.mxu0 0.0
  %680 = vmatprep.subr.mxu0 0.0
  %681 = vmatpush1.msra.mxu0 0.0
  %682 = vmatprep.subr.mxu0 0.0
  %683 = vmatpush1.msra.mxu0 0.0
  %684 = vmatprep.subr.mxu0 0.0
  %685 = vmatpush1.msra.mxu0 0.0
  %686 = vmatprep.subr.mxu0 0.0
  %687 = vmatpush1.msra.mxu0 0.0
  %688 = vmatprep.subr.mxu0 0.0
  %689 = vmatpush1.msra.mxu0 0.0
  %690 = vmatprep.subr.mxu0 0.0
  %691 = vmatpush1.msra.mxu0 0.0
  %692 = vmatprep.subr.mxu0 0.0
  %693 = vmatpush1.msra.mxu0 0.0
  %694 = vmatprep.subr.mxu0 0.0
  %695 = vmatpush1.msra.mxu0 0.0
  %696 = vmatprep.subr.mxu0 0.0
  %697 = vmatpush1.msra.mxu0 0.0
  %698 = vmatprep.subr.mxu0 0.0
  %699 = vmatpush1.msra.mxu0 0.0
  %700 = vmatprep.subr.mxu0 0.0
  %701 = vmatpush1.msra.mxu0 0.0
  %702 = vmatprep.subr.mxu0 0.0
  %703 = vmatpush1.msra.mxu0 0.0
  %704 = vmatprep.subr.mxu0 0.0
  %705 = vmatpush1.msra.mxu0 0.0
  %706 = vmatprep.subr.mxu0 0.0
  %707 = vmatpush1.msra.mxu0 0.0
  %708 = vmatprep.subr.mxu0 0.0
  %709 = vmatpush1.msra.mxu0 0.0
  %710 = vmatprep.subr.mxu0 0.0
  %711 = vmatpush1.msra.mxu0 0.0
  %712 = vmatprep.subr.mxu0 0.0
  %713 = vmatpush1.msra.mxu0 0.0
  %714 = vmatprep.subr.mxu0 0.0
  %715 = vmatpush1.msra.mxu0 0.0
  %716 = vmatprep.subr.mxu0 0.0
  %717 = vmatpush1.msra.mxu0 0.0
  %718 = vmatprep.subr.mxu0 0.0
  %719 = vmatpush1.msra.mxu0 0.0
  %720 = vmatprep.subr.mxu0 0.0
  %721 = vmatpush1.msra.mxu0 0.0
  %722 = vmatprep.subr.mxu0 0.0
  %723 = vmatpush1.msra.mxu0 0.0
  %724 = vmatprep.subr.mxu0 0.0
  %725 = vmatpush1.msra.mxu0 0.0
  %726 = vmatprep.subr.mxu0 0.0
  %727 = vmatpush1.msra.mxu0 0.0
  %728 = vmatprep.subr.mxu0 0.0
  %729 = vmatpush1.msra.mxu0 0.0
  %730 = vmatprep.subr.mxu0 0.0
  %731 = vmatpush1.msra.mxu0 0.0
  %732 = vmatprep.subr.mxu0 0.0
  %733 = vmatpush1.msra.mxu0 0.0
  %734 = vmatprep.mubr.f32.mxu0 0.0
  %735 = vmatmul.mubr.f32.gmra.mrb[0].mxu0 %v668
  %v736 = vpop.f32.mrb[0].mxu0
  %v737 = vadd.f32 0.0, %v736
  %v738 = vpop.f32.mrb[0].mxu0
  %739 = vdwg.mxu0
  %v741 = vrot.slane %v737, 4
  %v742 = vrot.slane %v737, 5
  %v745 = vadd.f32 %v108, %v741
  %v746 = vadd.f32 %v113, %v742
  %v747 = vxor.u32 %v745, 2147483648
  %v748 = vxor.u32 %v746, 2147483648
  %v749 = vmul.f32 %v747, 1.442695
  %v750 = vpow.pop %v749
  %v751 = vmul.f32 %v748, 1.442695
  %v752 = vpow.pop %v751
  %v753 = vadd.f32 %v750, 1.0
  %v754 = vadd.f32 %v752, 1.0
  %v755 = vrcp.pop %v753
  %v756 = vmul.f32 1.0, %v755
  %v757 = vrcp.pop %v754
  %v758 = vmul.f32 1.0, %v757
  %v759 = vtanh.pop %v745
  %v760 = vtanh.pop %v746
  %v763 = vrot.slane %v647, 7
  %v764 = vrot.slane %v648, 7
  %v767 = vmul.f32 %v756, %v763
  %v768 = vmul.f32 %v758, %v764
  %771 = vrot.lane.b32.xlu0 %v759, 64
  %v772 = vpop.permute.xlu0 %771
  %773 = vrot.lane.b32.xlu0 %v760, 64
  %v774 = vpop.permute.xlu0 %773
  %v777 = vmul.f32 %v756, %v772
  %v778 = vmul.f32 %v758, %v774
  %781 = vrot.lane.b32.xlu0 %v777, 32
  %v782 = vpop.permute.xlu0 %781
  %783 = vrot.lane.b32.xlu0 %v778, 32
  %v784 = vpop.permute.xlu0 %783
  %v787 = vadd.f32 %v767, %v782
  %v788 = vadd.f32 %v768, %v784
  %v789 = vtanh.pop %v787
  %v790 = vtanh.pop %v788
  %793 = vrot.lane.b32.xlu0 %v789, 64
  %v794 = vpop.permute.xlu0 %793
  %795 = vrot.lane.b32.xlu0 %v790, 64
  %v796 = vpop.permute.xlu0 %795
  %v799 = vmul.f32 %v756, %v794
  %v800 = vmul.f32 %v758, %v796
  %v803 = vrot.slane %v799, 4
  %v804 = vrot.slane %v800, 3
  %v805 = vsel %vm246, %v804, %v803
  %806 = vrot.lane.b32.xlu0 %v805, 32
  %v807 = vpop.permute.xlu0 %806
  %v808 = vsel %vm34, %v807, 0
  %810 = vmatprep.subr.mxu0 0.0
  %811 = vmatpush1.msra.mxu0 %v21
  %812 = vmatprep.subr.mxu0 0.0
  %813 = vmatpush1.msra.mxu0 %v22
  %814 = vmatprep.subr.mxu0 0.0
  %815 = vmatpush1.msra.mxu0 %v23
  %816 = vmatprep.subr.mxu0 0.0
  %817 = vmatpush1.msra.mxu0 %v24
  %818 = vmatprep.subr.mxu0 0.0
  %819 = vmatpush1.msra.mxu0 0.0
  %820 = vmatprep.subr.mxu0 0.0
  %821 = vmatpush1.msra.mxu0 0.0
  %822 = vmatprep.subr.mxu0 0.0
  %823 = vmatpush1.msra.mxu0 0.0
  %824 = vmatprep.subr.mxu0 0.0
  %825 = vmatpush1.msra.mxu0 0.0
  %826 = vmatprep.subr.mxu0 0.0
  %827 = vmatpush1.msra.mxu0 0.0
  %828 = vmatprep.subr.mxu0 0.0
  %829 = vmatpush1.msra.mxu0 0.0
  %830 = vmatprep.subr.mxu0 0.0
  %831 = vmatpush1.msra.mxu0 0.0
  %832 = vmatprep.subr.mxu0 0.0
  %833 = vmatpush1.msra.mxu0 0.0
  %834 = vmatprep.subr.mxu0 0.0
  %835 = vmatpush1.msra.mxu0 0.0
  %836 = vmatprep.subr.mxu0 0.0
  %837 = vmatpush1.msra.mxu0 0.0
  %838 = vmatprep.subr.mxu0 0.0
  %839 = vmatpush1.msra.mxu0 0.0
  %840 = vmatprep.subr.mxu0 0.0
  %841 = vmatpush1.msra.mxu0 0.0
  %842 = vmatprep.subr.mxu0 0.0
  %843 = vmatpush1.msra.mxu0 0.0
  %844 = vmatprep.subr.mxu0 0.0
  %845 = vmatpush1.msra.mxu0 0.0
  %846 = vmatprep.subr.mxu0 0.0
  %847 = vmatpush1.msra.mxu0 0.0
  %848 = vmatprep.subr.mxu0 0.0
  %849 = vmatpush1.msra.mxu0 0.0
  %850 = vmatprep.subr.mxu0 0.0
  %851 = vmatpush1.msra.mxu0 0.0
  %852 = vmatprep.subr.mxu0 0.0
  %853 = vmatpush1.msra.mxu0 0.0
  %854 = vmatprep.subr.mxu0 0.0
  %855 = vmatpush1.msra.mxu0 0.0
  %856 = vmatprep.subr.mxu0 0.0
  %857 = vmatpush1.msra.mxu0 0.0
  %858 = vmatprep.subr.mxu0 0.0
  %859 = vmatpush1.msra.mxu0 0.0
  %860 = vmatprep.subr.mxu0 0.0
  %861 = vmatpush1.msra.mxu0 0.0
  %862 = vmatprep.subr.mxu0 0.0
  %863 = vmatpush1.msra.mxu0 0.0
  %864 = vmatprep.subr.mxu0 0.0
  %865 = vmatpush1.msra.mxu0 0.0
  %866 = vmatprep.subr.mxu0 0.0
  %867 = vmatpush1.msra.mxu0 0.0
  %868 = vmatprep.subr.mxu0 0.0
  %869 = vmatpush1.msra.mxu0 0.0
  %870 = vmatprep.subr.mxu0 0.0
  %871 = vmatpush1.msra.mxu0 0.0
  %872 = vmatprep.subr.mxu0 0.0
  %873 = vmatpush1.msra.mxu0 0.0
  %874 = vmatprep.mubr.f32.mxu0 0.0
  %875 = vmatmul.mubr.f32.gmra.mrb[0].mxu0 %v808
  %v876 = vpop.f32.mrb[0].mxu0
  %v877 = vadd.f32 0.0, %v876
  %v878 = vpop.f32.mrb[0].mxu0
  %879 = vdwg.mxu0
  %v881 = vrot.slane %v877, 3
  %v882 = vrot.slane %v877, 4
  %v885 = vadd.f32 %v108, %v881
  %v886 = vadd.f32 %v113, %v882
  %v887 = vxor.u32 %v885, 2147483648
  %v888 = vxor.u32 %v886, 2147483648
  %v889 = vmul.f32 %v887, 1.442695
  %v890 = vpow.pop %v889
  %v891 = vmul.f32 %v888, 1.442695
  %v892 = vpow.pop %v891
  %v893 = vadd.f32 %v890, 1.0
  %v894 = vadd.f32 %v892, 1.0
  %v895 = vrcp.pop %v893
  %v896 = vmul.f32 1.0, %v895
  %v897 = vrcp.pop %v894
  %v898 = vmul.f32 1.0, %v897
  %v899 = vtanh.pop %v885
  %v900 = vtanh.pop %v886
  %v903 = vrot.slane %v787, 7
  %v904 = vrot.slane %v788, 7
  %v907 = vmul.f32 %v896, %v903
  %v908 = vmul.f32 %v898, %v904
  %911 = vrot.lane.b32.xlu0 %v899, 64
  %v912 = vpop.permute.xlu0 %911
  %913 = vrot.lane.b32.xlu0 %v900, 64
  %v914 = vpop.permute.xlu0 %913
  %v917 = vmul.f32 %v896, %v912
  %v918 = vmul.f32 %v898, %v914
  %921 = vrot.lane.b32.xlu0 %v917, 32
  %v922 = vpop.permute.xlu0 %921
  %923 = vrot.lane.b32.xlu0 %v918, 32
  %v924 = vpop.permute.xlu0 %923
  %v927 = vadd.f32 %v907, %v922
  %v928 = vadd.f32 %v908, %v924
  %v929 = vtanh.pop %v927
  %v930 = vtanh.pop %v928
  %933 = vrot.lane.b32.xlu0 %v929, 64
  %v934 = vpop.permute.xlu0 %933
  %935 = vrot.lane.b32.xlu0 %v930, 64
  %v936 = vpop.permute.xlu0 %935
  %v939 = vmul.f32 %v896, %v934
  %v940 = vmul.f32 %v898, %v936
  %v943 = vrot.slane %v939, 5
  %v944 = vrot.slane %v940, 4
  %v945 = vsel %vm246, %v944, %v943
  %946 = vrot.lane.b32.xlu0 %v945, 32
  %v947 = vpop.permute.xlu0 %946
  %v948 = vsel %vm34, %v947, 0
  %950 = vmatprep.subr.mxu0 0.0
  %951 = vmatpush1.msra.mxu0 %v21
  %952 = vmatprep.subr.mxu0 0.0
  %953 = vmatpush1.msra.mxu0 %v22
  %954 = vmatprep.subr.mxu0 0.0
  %955 = vmatpush1.msra.mxu0 %v23
  %956 = vmatprep.subr.mxu0 0.0
  %957 = vmatpush1.msra.mxu0 %v24
  %958 = vmatprep.subr.mxu0 0.0
  %959 = vmatpush1.msra.mxu0 0.0
  %960 = vmatprep.subr.mxu0 0.0
  %961 = vmatpush1.msra.mxu0 0.0
  %962 = vmatprep.subr.mxu0 0.0
  %963 = vmatpush1.msra.mxu0 0.0
  %964 = vmatprep.subr.mxu0 0.0
  %965 = vmatpush1.msra.mxu0 0.0
  %966 = vmatprep.subr.mxu0 0.0
  %967 = vmatpush1.msra.mxu0 0.0
  %968 = vmatprep.subr.mxu0 0.0
  %969 = vmatpush1.msra.mxu0 0.0
  %970 = vmatprep.subr.mxu0 0.0
  %971 = vmatpush1.msra.mxu0 0.0
  %972 = vmatprep.subr.mxu0 0.0
  %973 = vmatpush1.msra.mxu0 0.0
  %974 = vmatprep.subr.mxu0 0.0
  %975 = vmatpush1.msra.mxu0 0.0
  %976 = vmatprep.subr.mxu0 0.0
  %977 = vmatpush1.msra.mxu0 0.0
  %978 = vmatprep.subr.mxu0 0.0
  %979 = vmatpush1.msra.mxu0 0.0
  %980 = vmatprep.subr.mxu0 0.0
  %981 = vmatpush1.msra.mxu0 0.0
  %982 = vmatprep.subr.mxu0 0.0
  %983 = vmatpush1.msra.mxu0 0.0
  %984 = vmatprep.subr.mxu0 0.0
  %985 = vmatpush1.msra.mxu0 0.0
  %986 = vmatprep.subr.mxu0 0.0
  %987 = vmatpush1.msra.mxu0 0.0
  %988 = vmatprep.subr.mxu0 0.0
  %989 = vmatpush1.msra.mxu0 0.0
  %990 = vmatprep.subr.mxu0 0.0
  %991 = vmatpush1.msra.mxu0 0.0
  %992 = vmatprep.subr.mxu0 0.0
  %993 = vmatpush1.msra.mxu0 0.0
  %994 = vmatprep.subr.mxu0 0.0
  %995 = vmatpush1.msra.mxu0 0.0
  %996 = vmatprep.subr.mxu0 0.0
  %997 = vmatpush1.msra.mxu0 0.0
  %998 = vmatprep.subr.mxu0 0.0
  %999 = vmatpush1.msra.mxu0 0.0
  %1000 = vmatprep.subr.mxu0 0.0
  %1001 = vmatpush1.msra.mxu0 0.0
  %1002 = vmatprep.subr.mxu0 0.0
  %1003 = vmatpush1.msra.mxu0 0.0
  %1004 = vmatprep.subr.mxu0 0.0
  %1005 = vmatpush1.msra.mxu0 0.0
  %1006 = vmatprep.subr.mxu0 0.0
  %1007 = vmatpush1.msra.mxu0 0.0
  %1008 = vmatprep.subr.mxu0 0.0
  %1009 = vmatpush1.msra.mxu0 0.0
  %1010 = vmatprep.subr.mxu0 0.0
  %1011 = vmatpush1.msra.mxu0 0.0
  %1012 = vmatprep.subr.mxu0 0.0
  %1013 = vmatpush1.msra.mxu0 0.0
  %1014 = vmatprep.mubr.f32.mxu0 0.0
  %1015 = vmatmul.mubr.f32.gmra.mrb[0].mxu0 %v948
  %v1016 = vpop.f32.mrb[0].mxu0
  %v1017 = vadd.f32 0.0, %v1016
  %v1018 = vpop.f32.mrb[0].mxu0
  %1019 = vdwg.mxu0
  %v1021 = vrot.slane %v1017, 2
  %v1022 = vrot.slane %v1017, 3
  %v1025 = vadd.f32 %v108, %v1021
  %v1026 = vadd.f32 %v113, %v1022
  %v1027 = vxor.u32 %v1025, 2147483648
  %v1028 = vxor.u32 %v1026, 2147483648
  %v1029 = vmul.f32 %v1027, 1.442695
  %v1030 = vpow.pop %v1029
  %v1031 = vmul.f32 %v1028, 1.442695
  %v1032 = vpow.pop %v1031
  %v1033 = vadd.f32 %v1030, 1.0
  %v1034 = vadd.f32 %v1032, 1.0
  %v1035 = vrcp.pop %v1033
  %v1036 = vmul.f32 1.0, %v1035
  %v1037 = vrcp.pop %v1034
  %v1038 = vmul.f32 1.0, %v1037
  %v1039 = vtanh.pop %v1025
  %v1040 = vtanh.pop %v1026
  %v1043 = vrot.slane %v927, 7
  %v1044 = vrot.slane %v928, 7
  %v1047 = vmul.f32 %v1036, %v1043
  %v1048 = vmul.f32 %v1038, %v1044
  %1051 = vrot.lane.b32.xlu0 %v1039, 64
  %v1052 = vpop.permute.xlu0 %1051
  %1053 = vrot.lane.b32.xlu0 %v1040, 64
  %v1054 = vpop.permute.xlu0 %1053
  %v1057 = vmul.f32 %v1036, %v1052
  %v1058 = vmul.f32 %v1038, %v1054
  %1061 = vrot.lane.b32.xlu0 %v1057, 32
  %v1062 = vpop.permute.xlu0 %1061
  %1063 = vrot.lane.b32.xlu0 %v1058, 32
  %v1064 = vpop.permute.xlu0 %1063
  %v1067 = vadd.f32 %v1047, %v1062
  %v1068 = vadd.f32 %v1048, %v1064
  %v1069 = vtanh.pop %v1067
  %v1070 = vtanh.pop %v1068
  %1073 = vrot.lane.b32.xlu0 %v1069, 64
  %v1074 = vpop.permute.xlu0 %1073
  %1075 = vrot.lane.b32.xlu0 %v1070, 64
  %v1076 = vpop.permute.xlu0 %1075
  %v1079 = vmul.f32 %v1036, %v1074
  %v1080 = vmul.f32 %v1038, %v1076
  %v1083 = vrot.slane %v1079, 6
  %v1084 = vrot.slane %v1080, 5
  %v1085 = vsel %vm246, %v1084, %v1083
  %1086 = vrot.lane.b32.xlu0 %v1085, 32
  %v1087 = vpop.permute.xlu0 %1086
  %v1088 = vsel %vm34, %v1087, 0
  %1090 = vmatprep.subr.mxu0 0.0
  %1091 = vmatpush1.msra.mxu0 %v21
  %1092 = vmatprep.subr.mxu0 0.0
  %1093 = vmatpush1.msra.mxu0 %v22
  %1094 = vmatprep.subr.mxu0 0.0
  %1095 = vmatpush1.msra.mxu0 %v23
  %1096 = vmatprep.subr.mxu0 0.0
  %1097 = vmatpush1.msra.mxu0 %v24
  %1098 = vmatprep.subr.mxu0 0.0
  %1099 = vmatpush1.msra.mxu0 0.0
  %1100 = vmatprep.subr.mxu0 0.0
  %1101 = vmatpush1.msra.mxu0 0.0
  %1102 = vmatprep.subr.mxu0 0.0
  %1103 = vmatpush1.msra.mxu0 0.0
  %1104 = vmatprep.subr.mxu0 0.0
  %1105 = vmatpush1.msra.mxu0 0.0
  %1106 = vmatprep.subr.mxu0 0.0
  %1107 = vmatpush1.msra.mxu0 0.0
  %1108 = vmatprep.subr.mxu0 0.0
  %1109 = vmatpush1.msra.mxu0 0.0
  %1110 = vmatprep.subr.mxu0 0.0
  %1111 = vmatpush1.msra.mxu0 0.0
  %1112 = vmatprep.subr.mxu0 0.0
  %1113 = vmatpush1.msra.mxu0 0.0
  %1114 = vmatprep.subr.mxu0 0.0
  %1115 = vmatpush1.msra.mxu0 0.0
  %1116 = vmatprep.subr.mxu0 0.0
  %1117 = vmatpush1.msra.mxu0 0.0
  %1118 = vmatprep.subr.mxu0 0.0
  %1119 = vmatpush1.msra.mxu0 0.0
  %1120 = vmatprep.subr.mxu0 0.0
  %1121 = vmatpush1.msra.mxu0 0.0
  %1122 = vmatprep.subr.mxu0 0.0
  %1123 = vmatpush1.msra.mxu0 0.0
  %1124 = vmatprep.subr.mxu0 0.0
  %1125 = vmatpush1.msra.mxu0 0.0
  %1126 = vmatprep.subr.mxu0 0.0
  %1127 = vmatpush1.msra.mxu0 0.0
  %1128 = vmatprep.subr.mxu0 0.0
  %1129 = vmatpush1.msra.mxu0 0.0
  %1130 = vmatprep.subr.mxu0 0.0
  %1131 = vmatpush1.msra.mxu0 0.0
  %1132 = vmatprep.subr.mxu0 0.0
  %1133 = vmatpush1.msra.mxu0 0.0
  %1134 = vmatprep.subr.mxu0 0.0
  %1135 = vmatpush1.msra.mxu0 0.0
  %1136 = vmatprep.subr.mxu0 0.0
  %1137 = vmatpush1.msra.mxu0 0.0
  %1138 = vmatprep.subr.mxu0 0.0
  %1139 = vmatpush1.msra.mxu0 0.0
  %1140 = vmatprep.subr.mxu0 0.0
  %1141 = vmatpush1.msra.mxu0 0.0
  %1142 = vmatprep.subr.mxu0 0.0
  %1143 = vmatpush1.msra.mxu0 0.0
  %1144 = vmatprep.subr.mxu0 0.0
  %1145 = vmatpush1.msra.mxu0 0.0
  %1146 = vmatprep.subr.mxu0 0.0
  %1147 = vmatpush1.msra.mxu0 0.0
  %1148 = vmatprep.subr.mxu0 0.0
  %1149 = vmatpush1.msra.mxu0 0.0
  %1150 = vmatprep.subr.mxu0 0.0
  %1151 = vmatpush1.msra.mxu0 0.0
  %1152 = vmatprep.subr.mxu0 0.0
  %1153 = vmatpush1.msra.mxu0 0.0
  %1154 = vmatprep.mubr.f32.mxu0 0.0
  %1155 = vmatmul.mubr.f32.gmra.mrb[0].mxu0 %v1088
  %v1156 = vpop.f32.mrb[0].mxu0
  %v1157 = vadd.f32 0.0, %v1156
  %v1158 = vpop.f32.mrb[0].mxu0
  %1159 = vdwg.mxu0
  %v1161 = vrot.slane %v1157, 1
  %v1162 = vrot.slane %v1157, 2
  %v1165 = vadd.f32 %v108, %v1161
  %v1166 = vadd.f32 %v113, %v1162
  %v1167 = vxor.u32 %v1165, 2147483648
  %v1168 = vxor.u32 %v1166, 2147483648
  %v1169 = vmul.f32 %v1167, 1.442695
  %v1170 = vpow.pop %v1169
  %v1171 = vmul.f32 %v1168, 1.442695
  %v1172 = vpow.pop %v1171
  %v1173 = vadd.f32 %v1170, 1.0
  %v1174 = vadd.f32 %v1172, 1.0
  %v1175 = vrcp.pop %v1173
  %v1176 = vmul.f32 1.0, %v1175
  %v1177 = vrcp.pop %v1174
  %v1178 = vmul.f32 1.0, %v1177
  %v1179 = vtanh.pop %v1165
  %v1180 = vtanh.pop %v1166
  %v1183 = vrot.slane %v1067, 7
  %v1184 = vrot.slane %v1068, 7
  %v1187 = vmul.f32 %v1176, %v1183
  %v1188 = vmul.f32 %v1178, %v1184
  %1191 = vrot.lane.b32.xlu0 %v1179, 64
  %v1192 = vpop.permute.xlu0 %1191
  %1193 = vrot.lane.b32.xlu0 %v1180, 64
  %v1194 = vpop.permute.xlu0 %1193
  %v1197 = vmul.f32 %v1176, %v1192
  %v1198 = vmul.f32 %v1178, %v1194
  %1201 = vrot.lane.b32.xlu0 %v1197, 32
  %v1202 = vpop.permute.xlu0 %1201
  %1203 = vrot.lane.b32.xlu0 %v1198, 32
  %v1204 = vpop.permute.xlu0 %1203
  %v1207 = vadd.f32 %v1187, %v1202
  %v1208 = vadd.f32 %v1188, %v1204
  %v1209 = vtanh.pop %v1207
  %v1210 = vtanh.pop %v1208
  %1213 = vrot.lane.b32.xlu0 %v1209, 64
  %v1214 = vpop.permute.xlu0 %1213
  %1215 = vrot.lane.b32.xlu0 %v1210, 64
  %v1216 = vpop.permute.xlu0 %1215
  %v1219 = vmul.f32 %v1176, %v1214
  %v1220 = vmul.f32 %v1178, %v1216
  %1222 = vrot.lane.b32.xlu0 %v385, 64
  %v1223 = vpop.permute.xlu0 %1222
  %1225 = vrot.lane.b32.xlu0 %v525, 96
  %v1226 = vpop.permute.xlu0 %1225
  %1230 = vrot.lane.b32.xlu0 %v945, 64
  %v1231 = vpop.permute.xlu0 %1230
  %1233 = vrot.lane.b32.xlu0 %v1085, 96
  %v1234 = vpop.permute.xlu0 %1233
  %v1238 = vrot.slane %v1219, 7
  %v1239 = vrot.slane %v1220, 6
  %v1240 = vsel %vm246, %v1239, %v1238
  %v1242 = vsel %vm34, %v249, %v1223
  %vm1243 = vcmask 523264
  %v1244 = vsel %vm1243, %v1242, %v1226
  %vm1245 = vcmask 785408
  %v1246 = vsel %vm1245, %v1244, %v665
  %v1247 = vsel %vm34, %v807, %v1231
  %v1248 = vsel %vm1243, %v1247, %v1234
  %v1249 = vsel %vm1245, %v1248, %v1240
  %v1252 = vcombine.low %v1246, %v1249
  %v1254 = vunpack.c.l.s4 1983009808
  %v1255 = vunpack.c.0.s8 %v1254
  %v1256 = vlaneseq
  %v1257 = vshrl.u32 %v1256, 7
  %v1258 = vsub.s32 %v1255, %v1257
  %v1259 = vrot.slane %v1252, %v1258
  %1261 = vst [vmem:[%s4] sm:$0xf] %v1259
  // Predicated region
  $region18: #{_multi_scale_forward.1} parent=0 // pred_check
    _
  $region19: #{_multi_scale_forward.1} parent=0 // pred_check_branch
    %1263 = sbr.rel (0) target = $region21
  $region20: #{_multi_scale_forward.1} parent=0 // pred_region
    _
  $region21: #{_multi_scale_forward.1} parent=0 // pred_fallthru
    _
  // Predicated region
  $region22: #{_multi_scale_forward.1} parent=0 // pred_check
    _
  $region23: #{_multi_scale_forward.1} parent=0 // pred_check_branch
    %1265 = sbr.rel (0) target = $region25
  $region24: #{_multi_scale_forward.1} parent=0 // pred_region
    _
  $region25: #{_multi_scale_forward.1} parent=0 // pred_fallthru
    _

</llo_original>
